<compile_context>
chip_gen: v5e
topology: v5e:2x2
jax: 0.10.0
libtpu: 0.0.40
codegen_flags: <defaults>
</compile_context>

<pallas_src>
import jax
import jax.numpy as jnp
from jax.experimental import pallas as pl
from jax.experimental.pallas import tpu as pltpu


def _mean_pooling_kernel(map_ref, doc_ref, inv_lens_ref, out_ref, acc_ref):
    """One (batch, E-tile, L-tile) grid step.  Batch dim is squeezed out.

    map_ref      : (TE, TL)  entity_mapping tile (native dtype)
    doc_ref      : (TL, D)   doc_state tile (native dtype)
    inv_lens_ref : (TE, 1)   f32 reciprocal of entity_lens
    out_ref      : (TE, D)   output tile, written on the last L step
    acc_ref      : (TE, D)   f32 VMEM accumulator, persistent across L axis
    """
    l = pl.program_id(2)

    # Sum over the doc-length axis == MXU matmul with f32 accumulation.
    partial = jnp.dot(map_ref[...], doc_ref[...],
                      preferred_element_type=jnp.float32)

    @pl.when(l == 0)
    def _init():
        acc_ref[...] = partial          # skip the redundant zero+add pass

    @pl.when(l > 0)
    def _accum():
        acc_ref[...] += partial

    @pl.when(l == pl.num_programs(2) - 1)
    def _finalize():
        # (TE,1) f32 reciprocal broadcasts over D; multiply, not divide.
        out_ref[...] = (acc_ref[...] * inv_lens_ref[...]).astype(out_ref.dtype)


def _round_up(x, m):
    return ((x + m - 1) // m) * m


def _choose_tiles(B, E, L, D, map_bytes, doc_bytes, out_bytes,
                  block_e, block_l, vmem_budget):
    """Pick (te, tl) honoring the (8,128) layout rule and a VMEM budget.

    Invariants on return:
      te is a multiple of 8   OR te == round_up(E, te)   (i.e. full padded E)
      tl is a multiple of 128 OR tl == round_up(L, tl)   (i.e. full padded L)
    """
    # Initial choice: full dim if it fits the target, else an aligned tile.
    te = E if E <= block_e else _round_up(min(block_e, E), 8)
    tl = L if L <= block_l else _round_up(min(block_l, L), 128)

    # v7x megacore: make sure the parallel axes expose >= 2 units of work.
    if B * pl.cdiv(E, te) < 2 and E >= 16:
        te = _round_up(pl.cdiv(E, 2), 8)

    def est(te_, tl_):
        return (2 * te_ * tl_ * map_bytes      # double-buffered mapping tile
                + 2 * tl_ * D * doc_bytes      # double-buffered doc tile
                + 2 * te_ * 4                  # inv_lens tile
                + 2 * te_ * D * out_bytes      # double-buffered output tile
                + te_ * D * 4)                 # f32 accumulator

    # Shrink tiles until the working set fits the budget.
    while est(te, tl) > vmem_budget:
        if tl > 128:
            tl = max(128, _round_up(pl.cdiv(tl, 2), 128))
        elif te > 8:
            te = max(8, _round_up(pl.cdiv(te, 2), 8))
        else:
            break
    return te, tl, est(te, tl)


def mean_pooling(doc_state, entity_mapping, entity_lens,
                 *, block_e=1024, block_l=1024, vmem_budget=32 * 1024 * 1024):
    """Pallas MeanPooling forward.  Returns (B, E, D) mean-pooled entity states."""
    B, L, D = doc_state.shape
    Bm, E, Lm = entity_mapping.shape
    assert Bm == B and Lm == L, "entity_mapping must be (B, E, L)"
    assert entity_lens.shape == (B, E)

    out_dtype = doc_state.dtype
    # Mask follows the doc dtype (exact for 0/1 membership); no f32 upcasts.
    if entity_mapping.dtype != doc_state.dtype:
        entity_mapping = entity_mapping.astype(doc_state.dtype)

    map_bytes = jnp.dtype(entity_mapping.dtype).itemsize
    doc_bytes = jnp.dtype(doc_state.dtype).itemsize
    out_bytes = jnp.dtype(out_dtype).itemsize

    te, tl, vmem_est = _choose_tiles(B, E, L, D, map_bytes, doc_bytes,
                                     out_bytes, block_e, block_l, vmem_budget)

    # Pad E/L so the tiles divide them evenly (zero padding is exact for the
    # sum over L; padded entity rows are all-zero and sliced off afterwards).
    E_pad = _round_up(E, te)
    L_pad = _round_up(L, tl)

    inv_lens = (1.0 / entity_lens.astype(jnp.float32)).reshape(B, E, 1)

    if L_pad != L:
        doc_state = jnp.pad(doc_state, ((0, 0), (0, L_pad - L), (0, 0)))
        entity_mapping = jnp.pad(entity_mapping,
                                 ((0, 0), (0, 0), (0, L_pad - L)))
    if E_pad != E:
        entity_mapping = jnp.pad(entity_mapping,
                                 ((0, 0), (0, E_pad - E), (0, 0)))
        inv_lens = jnp.pad(inv_lens, ((0, 0), (0, E_pad - E), (0, 0)),
                           constant_values=1.0)

    grid = (B, E_pad // te, L_pad // tl)

    grid_spec = pltpu.PrefetchScalarGridSpec(
        num_scalar_prefetch=0,
        grid=grid,
        in_specs=[
            # entity_mapping (B, E_pad, L_pad)
            pl.BlockSpec((pl.Squeezed(), te, tl), lambda b, e, l: (b, e, l)),
            # doc_state (B, L_pad, D) -- independent of the E axis
            pl.BlockSpec((pl.Squeezed(), tl, D), lambda b, e, l: (b, l, 0)),
            # 1/entity_lens (B, E_pad, 1) -- independent of the L axis
            pl.BlockSpec((pl.Squeezed(), te, 1), lambda b, e, l: (b, e, 0)),
        ],
        out_specs=pl.BlockSpec((pl.Squeezed(), te, D),
                               lambda b, e, l: (b, e, 0)),
        scratch_shapes=[pltpu.VMEM((te, D), jnp.float32)],
    )

    # VMEM limit: actual requirement + 25% headroom (never the full 64 MiB of
    # a v7x core), floored at the common 32 MiB scoped default.
    vmem_limit = max(32 * 1024 * 1024,
                     min(int(vmem_est * 1.25) + (2 << 20), 112 * 1024 * 1024))

    out = pl.pallas_call(
        _mean_pooling_kernel,
        out_shape=jax.ShapeDtypeStruct((B, E_pad, D), out_dtype),
        grid_spec=grid_spec,
        compiler_params=pltpu.CompilerParams(
            dimension_semantics=("parallel", "parallel", "arbitrary"),
            vmem_limit_bytes=vmem_limit,
        ),
    )(entity_mapping, doc_state, inv_lens)

    if E_pad != E:
        out = out[:, :E, :]
    return out


def mean_pooling_ref(doc_state, entity_mapping, entity_lens):
    """Plain-JAX reference mirroring the PyTorch forward exactly."""
    entity_states = entity_mapping[:, :, :, None] * doc_state[:, None, :, :]
    return jnp.sum(entity_states, axis=2) / entity_lens[:, :, None]


if __name__ == "__main__":
    key = jax.random.PRNGKey(0)
    k_doc, k_map, k_doc2, k_map2 = jax.random.split(key, 4)

    # --- case 1: small, divisible shapes, f32 ---------------------------
    B, L, D, E = 2, 16, 32, 8
    doc_state = jax.random.normal(k_doc, (B, L, D), jnp.float32)
    entity_mapping = (jax.random.uniform(k_map, (B, E, L)) < 0.35).astype(jnp.float32)
    entity_lens = jnp.maximum(jnp.sum(entity_mapping, axis=-1), 1.0)

    out = mean_pooling(doc_state, entity_mapping, entity_lens)
    jax.block_until_ready(out)
    out_ref = mean_pooling_ref(doc_state, entity_mapping, entity_lens)
    assert out.shape == (B, E, D)
    assert jnp.allclose(out, out_ref, rtol=1e-5, atol=1e-5)

    # --- case 2: non-divisible shapes, forces padding + multi-tile grid --
    B2, L2, D2, E2 = 1, 200, 32, 20
    doc2 = jax.random.normal(k_doc2, (B2, L2, D2), jnp.float32)
    map2 = (jax.random.uniform(k_map2, (B2, E2, L2)) < 0.2).astype(jnp.float32)
    lens2 = jnp.maximum(jnp.sum(map2, axis=-1), 1.0)

    out2 = mean_pooling(doc2, map2, lens2, block_l=128)  # small tile -> L tiling
    jax.block_until_ready(out2)
    out2_ref = mean_pooling_ref(doc2, map2, lens2)
    assert out2.shape == (B2, E2, D2)
    assert jnp.allclose(out2, out2_ref, rtol=1e-5, atol=1e-5)

    print("KERNEL_OK")
</pallas_src>

<mosaic_0001>
module attributes {stable_mosaic.version = 11 : i64} {
  func.func @_mean_pooling_kernel(%arg0: i32, %arg1: i32, %arg2: i32, %arg3: memref<1x8x16xf32, #tpu.memory_space<vmem>>, %arg4: memref<1x16x32xf32, #tpu.memory_space<vmem>>, %arg5: memref<1x8x1xf32, #tpu.memory_space<vmem>>, %arg6: memref<1x8x32xf32, #tpu.memory_space<vmem>>, %arg7: memref<8x32xf32, #tpu.memory_space<vmem>>) attributes {dimension_semantics = [#tpu.dimension_semantics<parallel>, #tpu.dimension_semantics<parallel>, #tpu.dimension_semantics<arbitrary>], iteration_bounds = array<i64: 2, 1, 1>, scalar_prefetch = 0 : i64, scratch_operands = 1 : i64, tpu.core_type = #tpu.core_type<tc>, window_params = [{transform_indices = @transform_0, window_bounds = array<i64: 1, 8, 16>}, {transform_indices = @transform_1, window_bounds = array<i64: 1, 16, 32>}, {transform_indices = @transform_2, window_bounds = array<i64: 1, 8, 1>}, {transform_indices = @transform_3, window_bounds = array<i64: 1, 8, 32>}]} {
    %c0 = arith.constant 0 : index
    %c0_0 = arith.constant 0 : index
    %c0_1 = arith.constant 0 : index
    %0 = vector.load %arg3[%c0, %c0_0, %c0_1] : memref<1x8x16xf32, #tpu.memory_space<vmem>>, vector<1x8x16xf32>
    %1 = vector.shape_cast %0 : vector<1x8x16xf32> to vector<8x16xf32>
    %c0_2 = arith.constant 0 : index
    %c0_3 = arith.constant 0 : index
    %c0_4 = arith.constant 0 : index
    %2 = vector.load %arg4[%c0_2, %c0_3, %c0_4] : memref<1x16x32xf32, #tpu.memory_space<vmem>>, vector<1x16x32xf32>
    %3 = vector.shape_cast %2 : vector<1x16x32xf32> to vector<16x32xf32>
    %cst = arith.constant dense<0.000000e+00> : vector<8x32xf32>
    %4 = tpu.matmul %1, %3, %cst {dimension_numbers = #tpu.dot_dimension_numbers<[1], [0], [0], [1], [0, 0, 1, 1], [], []>} : vector<8x16xf32>, vector<16x32xf32>, vector<8x32xf32> -> vector<8x32xf32>
    %c0_i32 = arith.constant 0 : i32
    %5 = arith.cmpi eq, %arg2, %c0_i32 : i32
    %6 = arith.extui %5 : i1 to i32
    %c0_i32_5 = arith.constant 0 : i32
    %7 = arith.cmpi ne, %6, %c0_i32_5 : i32
    scf.if %7 {
      %c0_10 = arith.constant 0 : index
      %c0_11 = arith.constant 0 : index
      %14 = vector.load %arg7[%c0_10, %c0_11] : memref<8x32xf32, #tpu.memory_space<vmem>>, vector<8x32xf32>
      tpu.vector_store %arg7[%c0_10, %c0_11], %4 {strides = array<i32>} : memref<8x32xf32, #tpu.memory_space<vmem>>, vector<8x32xf32>,
    } else {
    }
    %c0_i32_6 = arith.constant 0 : i32
    %8 = arith.cmpi sgt, %arg2, %c0_i32_6 : i32
    %9 = arith.extui %8 : i1 to i32
    %c0_i32_7 = arith.constant 0 : i32
    %10 = arith.cmpi ne, %9, %c0_i32_7 : i32
    scf.if %10 {
      %c0_10 = arith.constant 0 : index
      %c0_11 = arith.constant 0 : index
      %14 = vector.load %arg7[%c0_10, %c0_11] : memref<8x32xf32, #tpu.memory_space<vmem>>, vector<8x32xf32>
      %15 = arith.addf %14, %4 : vector<8x32xf32>
      %c0_12 = arith.constant 0 : index
      %c0_13 = arith.constant 0 : index
      %16 = vector.load %arg7[%c0_12, %c0_13] : memref<8x32xf32, #tpu.memory_space<vmem>>, vector<8x32xf32>
      tpu.vector_store %arg7[%c0_12, %c0_13], %15 {strides = array<i32>} : memref<8x32xf32, #tpu.memory_space<vmem>>, vector<8x32xf32>,
    } else {
    }
    %c0_i32_8 = arith.constant 0 : i32
    %11 = arith.cmpi eq, %arg2, %c0_i32_8 : i32
    %12 = arith.extui %11 : i1 to i32
    %c0_i32_9 = arith.constant 0 : i32
    %13 = arith.cmpi ne, %12, %c0_i32_9 : i32
    scf.if %13 {
      %c0_10 = arith.constant 0 : index
      %c0_11 = arith.constant 0 : index
      %14 = vector.load %arg7[%c0_10, %c0_11] : memref<8x32xf32, #tpu.memory_space<vmem>>, vector<8x32xf32>
      %c0_12 = arith.constant 0 : index
      %c0_13 = arith.constant 0 : index
      %c0_14 = arith.constant 0 : index
      %15 = vector.load %arg5[%c0_12, %c0_13, %c0_14] : memref<1x8x1xf32, #tpu.memory_space<vmem>>, vector<1x8x1xf32>
      %16 = vector.shape_cast %15 : vector<1x8x1xf32> to vector<8x1xf32>
      %17 = vector.broadcast %16 : vector<8x1xf32> to vector<8x32xf32>
      %18 = arith.mulf %14, %17 : vector<8x32xf32>
      %c0_15 = arith.constant 0 : index
      %c0_16 = arith.constant 0 : index
      %c0_17 = arith.constant 0 : index
      %19 = vector.load %arg6[%c0_15, %c0_16, %c0_17] : memref<1x8x32xf32, #tpu.memory_space<vmem>>, vector<1x8x32xf32>
      %20 = vector.shape_cast %19 : vector<1x8x32xf32> to vector<8x32xf32>
      %21 = vector.shape_cast %18 : vector<8x32xf32> to vector<1x8x32xf32>
      tpu.vector_store %arg6[%c0_15, %c0_16, %c0_17], %21 {strides = array<i32>} : memref<1x8x32xf32, #tpu.memory_space<vmem>>, vector<1x8x32xf32>,
    } else {
    }
    return
  }
  func.func @transform_0(%arg0: i32, %arg1: i32, %arg2: i32) -> (i32, i32, i32) {
    %c0_i32 = arith.constant 0 : i32
    return %arg0, %arg1, %arg2 : i32, i32, i32
  }
  func.func @transform_1(%arg0: i32, %arg1: i32, %arg2: i32) -> (i32, i32, i32) {
    %c0_i32 = arith.constant 0 : i32
    %c0_i32_0 = arith.constant 0 : i32
    return %arg0, %arg2, %c0_i32 : i32, i32, i32
  }
  func.func @transform_2(%arg0: i32, %arg1: i32, %arg2: i32) -> (i32, i32, i32) {
    %c0_i32 = arith.constant 0 : i32
    %c0_i32_0 = arith.constant 0 : i32
    return %arg0, %arg1, %c0_i32 : i32, i32, i32
  }
  func.func @transform_3(%arg0: i32, %arg1: i32, %arg2: i32) -> (i32, i32, i32) {
    %c0_i32 = arith.constant 0 : i32
    %c0_i32_0 = arith.constant 0 : i32
    return %arg0, %arg1, %c0_i32 : i32, i32, i32
  }
}

</mosaic_0001>

<llo_original>
// kernel: tpu_custom_call.1
$region0: #{tpu_custom_call.1}
  #allocation0 [shape = 'u32[]', space=smem, size = 0x4, offset = 0x4, fixed_abs, tag = 'smem constant byte address 0x4 - core index']
  #allocation1 [shape = 'u32[72,128]{1,0:T(1,128)}', space=vmem, size = 0x9000, scoped, tag = 'internal scratch']
  #allocation2 [shape = 'f32[8,32]{1,0:T(8,128)}', space=vmem, size = 0x1000, scoped, tag = 'scratch operand']
  %s0 = inlined_call_operand.vmem [shape: f32[2,8,16], index: 0, kind: input, shape index: {}]
  %s1 = inlined_call_operand.hbm [shape: f32[2,16,32], index: 1, kind: input, shape index: {}]
  %s2 = inlined_call_operand.vmem [shape: f32[2,8,1], index: 2, kind: input, shape index: {}]
  %s3 = inlined_call_operand.hbm [shape: f32[2,8,32], index: 3, kind: output, shape index: {}]
  %s4 = sld [smem:[#allocation0]]
  $region61: #{tpu_custom_call.1} parent=0
    _
  %s6 = ssub.s32 1, %s4
  %s7 = scalar_select 0, %s6, %s4
  $region1: #{tpu_custom_call.1} parent=0
    #allocation3 [shape = 'u8[16384]{0}', space=vmem, size = 0x4000, scoped, tag = 'input window, operand 1']
    #allocation4 [shape = 's32[2]{0}', space=sflag, size = 0x8, scoped, tag = 'scoped memory for tpu_custom_call.1']
    #allocation5 [shape = 's32[2]{0}', space=sflag, size = 0x8, scoped, tag = 'scoped memory for tpu_custom_call.1']
    #allocation6 [shape = 'u8[8192]{0}', space=vmem, size = 0x2000, scoped, tag = 'output window, operand 0']
    %8 = vsyncpa [#allocation4], 0
    %s9 = scalar_lea.sflag [#allocation4], 1
    %10 = vsyncpa %s9, 0
    %11 = vsyncpa [#allocation5], 0
    %s12 = scalar_lea.sflag [#allocation5], 1
    %13 = vsyncpa %s12, 0
    loop: start=0, step=1, limit=4
    $region2: #{tpu_custom_call.1} parent=1 // loop_pre_header
      _
    $region3: #{tpu_custom_call.1} parent=1 // loop_header
      %s15 = sphi 0, %s19
      %p16 = scmp.ge.s32.totalorder %s15, 4
      %s22 = sphi 0, %s41
      %s23 = sphi 0, %s37
      %s24 = sphi 0, %s33
      %s25 = sphi 0, %s22
      %s26 = sphi 0, %s23
      %s27 = sphi 0, %s24
      %s28 = sphi 0, %s25
      %s29 = sphi 0, %s26
      %s30 = sphi 0, %s27
      %s48 = sphi 0, %s50
      %s51 = sphi 0, %s48
      %s52 = sphi 0, %s51
      %s68 = sphi 0, %s52
      %s76 = sphi 0, %s78
      %s79 = sphi 0, %s76
      %s80 = sphi 0, %s79
      %s96 = sphi 0, %s80
      %s104 = sphi 0, %s106
      %s107 = sphi 0, %s104
      %s108 = sphi 0, %s107
      %s124 = sphi 0, %s108
      %s132 = sphi 0, %s134
      %s135 = sphi 0, %s132
      %s136 = sphi 0, %s135
      %s152 = sphi 0, %s136
    $region4: #{tpu_custom_call.1} parent=1 // loop_header_branch
      %18 = sbr.rel (%p16) target = $region8
    $region5: #{tpu_custom_call.1} parent=1 // loop_body
      %s20 = ssub.s32 %s15, 1
      %s21 = ssub.s32 %s15, 2
      %s31 = sadd.s32 1, %s24
      %p32 = scmp.ge.s32.totalorder %s31, 1
      %s33 = scalar_select %p32, 0, %s31
      %s34 = sadd.s32 1, %s23
      %s35 = scalar_select %p32, %s34, %s23
      %p36 = scmp.ge.s32.totalorder %s35, 1
      %s37 = scalar_select %p36, 0, %s35
      %s38 = sadd.s32 1, %s22
      %s39 = scalar_select %p36, %s38, %s22
      %p40 = scmp.ge.s32.totalorder %s39, 2
      %s41 = scalar_select %p40, 0, %s39
      %s42 = ssub.s32 %s22, %s41
      %s43 = ssub.s32 %s23, %s37
      %s44 = sor.u32 %s42, %s43
      %s45 = ssub.s32 %s24, %s33
      %s46 = sor.u32 %s44, %s45
      %p47 = scmp.eq.s32.totalorder %s46, 0
      %s49 = sadd.s32 %s48, 1
      %s50 = scalar_select %p47, %s48, %s49
      %p53 = pneg %p47
      %p54 = scmp.eq.s32.totalorder %s15, 1
      %p55 = por %p53, %p54
      %p56 = scmp.ne.s32.totalorder %s48, %s51
      %p57 = scmp.eq.s32.totalorder %s15, 0
      %p58 = por %p56, %p57
      %p59 = scmp.ne.s32.totalorder %s48, %s51
      %p60 = scmp.eq.s32.totalorder %s20, 1
      %p61 = por %p59, %p60
      %p62 = scmp.ne.s32.totalorder %s51, %s52
      %p63 = scmp.eq.s32.totalorder %s20, 0
      %p64 = por %p62, %p63
      %p65 = scmp.ne.s32.totalorder %s51, %s52
      %p66 = scmp.eq.s32.totalorder %s21, 1
      %p67 = por %p65, %p66
      %p69 = scmp.ne.s32.totalorder %s52, %s68
      %p70 = scmp.eq.s32.totalorder %s21, 0
      %p71 = por %p69, %p70
      %s72 = ssub.s32 %s22, %s41
      %s73 = ssub.s32 %s24, %s33
      %s74 = sor.u32 %s72, %s73
      %p75 = scmp.eq.s32.totalorder %s74, 0
      %s77 = sadd.s32 %s76, 1
      %s78 = scalar_select %p75, %s76, %s77
      %p81 = pneg %p75
      %p82 = scmp.eq.s32.totalorder %s15, 1
      %p83 = por %p81, %p82
      %p84 = scmp.ne.s32.totalorder %s76, %s79
      %p85 = scmp.eq.s32.totalorder %s15, 0
      %p86 = por %p84, %p85
      %p87 = scmp.ne.s32.totalorder %s76, %s79
      %p88 = scmp.eq.s32.totalorder %s20, 1
      %p89 = por %p87, %p88
      %p90 = scmp.ne.s32.totalorder %s79, %s80
      %p91 = scmp.eq.s32.totalorder %s20, 0
      %p92 = por %p90, %p91
      %p93 = scmp.ne.s32.totalorder %s79, %s80
      %p94 = scmp.eq.s32.totalorder %s21, 1
      %p95 = por %p93, %p94
      %p97 = scmp.ne.s32.totalorder %s80, %s96
      %p98 = scmp.eq.s32.totalorder %s21, 0
      %p99 = por %p97, %p98
      %s100 = ssub.s32 %s22, %s41
      %s101 = ssub.s32 %s23, %s37
      %s102 = sor.u32 %s100, %s101
      %p103 = scmp.eq.s32.totalorder %s102, 0
      %s105 = sadd.s32 %s104, 1
      %s106 = scalar_select %p103, %s104, %s105
      %p109 = pneg %p103
      %p110 = scmp.eq.s32.totalorder %s15, 1
      %p111 = por %p109, %p110
      %p112 = scmp.ne.s32.totalorder %s104, %s107
      %p113 = scmp.eq.s32.totalorder %s15, 0
      %p114 = por %p112, %p113
      %p115 = scmp.ne.s32.totalorder %s104, %s107
      %p116 = scmp.eq.s32.totalorder %s20, 1
      %p117 = por %p115, %p116
      %p118 = scmp.ne.s32.totalorder %s107, %s108
      %p119 = scmp.eq.s32.totalorder %s20, 0
      %p120 = por %p118, %p119
      %p121 = scmp.ne.s32.totalorder %s107, %s108
      %p122 = scmp.eq.s32.totalorder %s21, 1
      %p123 = por %p121, %p122
      %p125 = scmp.ne.s32.totalorder %s108, %s124
      %p126 = scmp.eq.s32.totalorder %s21, 0
      %p127 = por %p125, %p126
      %s128 = ssub.s32 %s22, %s41
      %s129 = ssub.s32 %s23, %s37
      %s130 = sor.u32 %s128, %s129
      %p131 = scmp.eq.s32.totalorder %s130, 0
      %s133 = sadd.s32 %s132, 1
      %s134 = scalar_select %p131, %s132, %s133
      %p137 = pneg %p131
      %p138 = scmp.eq.s32.totalorder %s15, 1
      %p139 = por %p137, %p138
      %p140 = scmp.ne.s32.totalorder %s132, %s135
      %p141 = scmp.eq.s32.totalorder %s15, 0
      %p142 = por %p140, %p141
      %p143 = scmp.ne.s32.totalorder %s132, %s135
      %p144 = scmp.eq.s32.totalorder %s20, 1
      %p145 = por %p143, %p144
      %p146 = scmp.ne.s32.totalorder %s135, %s136
      %p147 = scmp.eq.s32.totalorder %s20, 0
      %p148 = por %p146, %p147
      %p149 = scmp.ne.s32.totalorder %s135, %s136
      %p150 = scmp.eq.s32.totalorder %s21, 1
      %p151 = por %p149, %p150
      %p153 = scmp.ne.s32.totalorder %s136, %s152
      %p154 = scmp.eq.s32.totalorder %s21, 0
      %p155 = por %p153, %p154
      %p156 = scmp.le.s32.totalorder 1, %s15
      %p157 = scmp.lt.s32.totalorder %s15, 3
      %p158 = pnand %p156, %p157
      %p159 = pneg %p158
      // Predicated region
      $region9: #{tpu_custom_call.1} parent=5 // pred_check
        _
      $region10: #{tpu_custom_call.1} parent=5 // pred_check_branch
        %161 = sbr.rel (%p158) target = $region12
      $region11: #{tpu_custom_call.1} parent=5 // pred_region
        %s162 = ssub.s32 %s15, 1
      $region12: #{tpu_custom_call.1} parent=5 // pred_fallthru
        _
      %p163 = scmp.lt.s32.totalorder %s15, 2
      // Predicated region
      $region13: #{tpu_custom_call.1} parent=5 // pred_check
        %p164 = pneg %p163
      $region14: #{tpu_custom_call.1} parent=5 // pred_check_branch
        %166 = sbr.rel (%p164) target = $region16
      $region15: #{tpu_custom_call.1} parent=5 // pred_region
        // Predicated region
        $region17: #{tpu_custom_call.1} parent=15 // pred_check
          %p167 = pneg %p58
        $region18: #{tpu_custom_call.1} parent=15 // pred_check_branch
          %169 = sbr.rel (%p167) target = $region20
        $region19: #{tpu_custom_call.1} parent=15 // pred_region
          %p170 = scmp.lt.s32.totalorder %s22, 1
          %s171 = scalar_select %p170, %s22, 1
          %p172 = scmp.lt.s32.totalorder %s23, 0
          %s173 = scalar_select %p172, %s23, 0
          %p174 = scmp.lt.s32.totalorder %s24, 0
          %s175 = scalar_select %p174, %s24, 0
          %s176 = sadd.s32 %s175, %s173
          %s177 = sadd.s32 %s176, %s171
          %s178 = smul.addr %s177, 8
          %s179 = scalar_lea.vmem %s0, %s178
        $region20: #{tpu_custom_call.1} parent=15 // pred_fallthru
          _
        // Predicated region
        $region21: #{tpu_custom_call.1} parent=15 // pred_check
          %p180 = pneg %p86
        $region22: #{tpu_custom_call.1} parent=15 // pred_check_branch
          %182 = sbr.rel (%p180) target = $region24
        $region23: #{tpu_custom_call.1} parent=15 // pred_region
          %s183 = sand.u32 %s76, 1
          %s184 = scalar_lea.sflag [#allocation4], %s183
          %s185 = sand.u32 %s76, 1
          %s186 = smul.addr %s185, 16
          %s187 = scalar_lea.vmem [#allocation3], %s186
          %s188 = smul.u32 2, %s24
          %190 = vsyncadd %s184, 0
          %s191 = smul.addr %s22, 2
          %s192 = sadd.s32 %s188, %s191
          %s193 = smul.addr %s192, 8
          %s194 = scalar_lea.hbm %s1, %s193
          %s195 = sshll.u32 %s194, 4
          %s196 = int_to_ptr.hbm [resolvable:$true] %s195
          %s197 = sshll.u32 %s187, 4
          %s198 = int_to_ptr.vmem [resolvable:$true] %s197
          %203 = dma.hbm_to_vmem [thread:$0]  %s196, 256, %s198, %s184, 128, 128, 8
        $region24: #{tpu_custom_call.1} parent=15 // pred_fallthru
          _
        // Predicated region
        $region25: #{tpu_custom_call.1} parent=15 // pred_check
          %p204 = pneg %p114
        $region26: #{tpu_custom_call.1} parent=15 // pred_check_branch
          %206 = sbr.rel (%p204) target = $region28
        $region27: #{tpu_custom_call.1} parent=15 // pred_region
          %p207 = scmp.lt.s32.totalorder %s22, 1
          %s208 = scalar_select %p207, %s22, 1
          %p209 = scmp.lt.s32.totalorder %s23, 0
          %s210 = scalar_select %p209, %s23, 0
          %s211 = sadd.s32 %s210, %s208
          %s212 = smul.addr %s211, 8
          %s213 = scalar_lea.vmem %s2, %s212
        $region28: #{tpu_custom_call.1} parent=15 // pred_fallthru
          _
      $region16: #{tpu_custom_call.1} parent=5 // pred_fallthru
        _
      %p214 = scmp.le.s32.totalorder 1, %s15
      %p215 = scmp.lt.s32.totalorder %s15, 3
      %p216 = pnand %p214, %p215
      %p217 = pneg %p216
      // Predicated region
      $region29: #{tpu_custom_call.1} parent=5 // pred_check
        _
      $region30: #{tpu_custom_call.1} parent=5 // pred_check_branch
        %219 = sbr.rel (%p216) target = $region32
      $region31: #{tpu_custom_call.1} parent=5 // pred_region
        %s220 = ssub.s32 %s15, 1
        %s221 = sand.u32 %s79, 1
        %s222 = scalar_lea.sflag [#allocation4], %s221
        %s223 = sand.u32 %s79, 1
        %s224 = smul.addr %s223, 16
        %s225 = scalar_lea.vmem [#allocation3], %s224
        // Predicated region
        $region33: #{tpu_custom_call.1} parent=31 // pred_check
          %p226 = pneg %p92
        $region34: #{tpu_custom_call.1} parent=31 // pred_check_branch
          %228 = sbr.rel (%p226) target = $region36
        $region35: #{tpu_custom_call.1} parent=31 // pred_region
          %230 = dma.done %s222, 256
        $region36: #{tpu_custom_call.1} parent=31 // pred_fallthru
          _
        %p231 = scmp.lt.s32.totalorder %s25, 1
        %s232 = scalar_select %p231, %s25, 1
        %p233 = scmp.lt.s32.totalorder %s26, 0
        %s234 = scalar_select %p233, %s26, 0
        %p235 = scmp.lt.s32.totalorder %s27, 0
        %s236 = scalar_select %p235, %s27, 0
        %s237 = sadd.s32 %s236, %s234
        %s238 = sadd.s32 %s237, %s232
        %s239 = smul.addr %s238, 8
        %s240 = scalar_lea.vmem %s0, %s239
        %p241 = pneg %p64
        %p242 = pneg %p61
        %s243 = sand.u32 %s79, 1
        %s244 = scalar_lea.sflag [#allocation4], %s243
        %s245 = sand.u32 %s79, 1
        %s246 = smul.addr %s245, 16
        %s247 = scalar_lea.vmem [#allocation3], %s246
        %p248 = pneg %p92
        %p249 = pneg %p89
        %p250 = scmp.lt.s32.totalorder %s25, 1
        %s251 = scalar_select %p250, %s25, 1
        %p252 = scmp.lt.s32.totalorder %s26, 0
        %s253 = scalar_select %p252, %s26, 0
        %s254 = sadd.s32 %s253, %s251
        %s255 = smul.addr %s254, 8
        %s256 = scalar_lea.vmem %s2, %s255
        %p257 = pneg %p120
        %p258 = pneg %p117
        %p259 = pneg %p148
        %p260 = pneg %p145
        %s261 = sand.u32 %s135, 1
        %s262 = scalar_lea.sflag [#allocation5], %s261
        %s263 = sand.u32 %s135, 1
        %s264 = smul.addr %s263, 8
        %s265 = scalar_lea.vmem [#allocation6], %s264
        %p266 = scmp.lt.s32.totalorder %s25, 1
        %s267 = scalar_select %p266, %s25, 1
        %p268 = scmp.lt.s32.totalorder %s26, 0
        %s269 = scalar_select %p268, %s26, 0
        %p270 = scmp.lt.s32.totalorder %s27, 0
        %s271 = scalar_select %p270, %s27, 0
        %s272 = sadd.s32 %s271, %s269
        %s273 = sadd.s32 %s272, %s267
        %s274 = smul.addr %s273, 8
        %s275 = scalar_lea.vmem %s0, %s274
        %s276 = smul.u32 2, %s27
        %p277 = scmp.lt.s32.totalorder %s25, 1
        %s278 = scalar_select %p277, %s25, 1
        %p279 = scmp.lt.s32.totalorder %s26, 0
        %s280 = scalar_select %p279, %s26, 0
        %s281 = sadd.s32 %s280, %s278
        %s282 = smul.addr %s281, 8
        %s283 = scalar_lea.vmem %s2, %s282
        %v284 = vld [vmem:[%s275] sm:$0xff]
        %v285 = vld [vmem:[%s225] sm:$0xff]
        %v286 = vld [vmem:[%s225 + $0x8] sm:$0xff]
        %vm287 = vcmask 130048
        %v289 = vsel %vm287, %v284, 0
        %291 = vmatpush.msra.mxu0 0.0
        %292 = vmatpush.msra.mxu0 0.0
        %293 = vmatpush.msra.mxu0 0.0
        %294 = vmatpush.msra.mxu0 0.0
        %295 = vmatpush.msra.mxu0 0.0
        %296 = vmatpush.msra.mxu0 0.0
        %297 = vmatpush.msra.mxu0 0.0
        %298 = vmatpush.msra.mxu0 0.0
        %299 = vmatpush.msra.mxu0 0.0
        %300 = vmatpush.msra.mxu0 0.0
        %301 = vmatpush.msra.mxu0 0.0
        %302 = vmatpush.msra.mxu0 0.0
        %303 = vmatpush.msra.mxu0 0.0
        %304 = vmatpush.msra.mxu0 0.0
        %305 = vmatpush.msra.mxu0 %v286
        %306 = vmatpush.msra.mxu0 %v285
        %307 = vmatmul.f32.gmra.mxu0 %v289
        %v308 = vpop.f32.mrf.mxu0
        %v309 = vadd.f32 0.0, %v308
        %310 = vdwg.mxu0
        %p311 = scmp.eq.s32.totalorder %s27, 0
        // Predicated region
        $region37: #{tpu_custom_call.1} parent=31 // pred_check
          %p312 = pneg %p311
        $region38: #{tpu_custom_call.1} parent=31 // pred_check_branch
          %314 = sbr.rel (%p312) target = $region40
        $region39: #{tpu_custom_call.1} parent=31 // pred_region
          %vm315 = vcmask 261120
          %316 = vst.msk [vmem:[#allocation2] sm:$0xff] %vm315, %v309
        $region40: #{tpu_custom_call.1} parent=31 // pred_fallthru
          _
        %p317 = scmp.gt.s32.totalorder %s27, 0
        // Predicated region
        $region41: #{tpu_custom_call.1} parent=31 // pred_check
          %p318 = pneg %p317
        $region42: #{tpu_custom_call.1} parent=31 // pred_check_branch
          %320 = sbr.rel (%p318) target = $region44
        $region43: #{tpu_custom_call.1} parent=31 // pred_region
          %v321 = vld [vmem:[#allocation2] sm:$0xff]
          %v322 = vadd.f32 %v321, %v309
          %vm323 = vcmask 261120
          %324 = vst.msk [vmem:[#allocation2] sm:$0xff] %vm323, %v322
        $region44: #{tpu_custom_call.1} parent=31 // pred_fallthru
          _
        // Predicated region
        $region45: #{tpu_custom_call.1} parent=31 // pred_check
          %p325 = pneg %p311
        $region46: #{tpu_custom_call.1} parent=31 // pred_check_branch
          %327 = sbr.rel (%p325) target = $region48
        $region47: #{tpu_custom_call.1} parent=31 // pred_region
          %v328 = vld [vmem:[#allocation2] sm:$0xff]
          %v329 = vld [vmem:[%s283] sm:$0xff]
          %331 = vset.pattern.permute.xlu0 0
          %332 = vperm.xlu0 %331, %v329
          %v333 = vpop.permute.xlu0 %332
          %v335 = vmul.f32 %v328, %v333
          %vm336 = vcmask 261120
          %337 = vst.msk [vmem:[%s265] sm:$0xff] %vm336, %v335
        $region48: #{tpu_custom_call.1} parent=31 // pred_fallthru
          _
        %s338 = sand.u32 %s135, 1
        %s339 = scalar_lea.sflag [#allocation5], %s338
        %s340 = sand.u32 %s135, 1
        %s341 = smul.addr %s340, 8
        %s342 = scalar_lea.vmem [#allocation6], %s341
        // Predicated region
        $region49: #{tpu_custom_call.1} parent=31 // pred_check
          %p343 = pneg %p145
        $region50: #{tpu_custom_call.1} parent=31 // pred_check_branch
          %345 = sbr.rel (%p343) target = $region52
        $region51: #{tpu_custom_call.1} parent=31 // pred_region
          %347 = vsyncadd %s339, 0
          %s348 = sadd.s32 %s26, %s25
          %s349 = smul.addr %s348, 8
          %s350 = scalar_lea.hbm %s3, %s349
          %s352 = sshll.u32 %s342, 4
          %s353 = int_to_ptr.vmem [resolvable:$true] %s352
          %s354 = sshll.u32 %s350, 4
          %s355 = int_to_ptr.hbm [resolvable:$true] %s354
          %357 = dma.vmem_to_hbm [thread:$0]  %s353, 128, %s355, %s339
        $region52: #{tpu_custom_call.1} parent=31 // pred_fallthru
          _
      $region32: #{tpu_custom_call.1} parent=5 // pred_fallthru
        _
      %p358 = scmp.le.s32.totalorder 2, %s15
      // Predicated region
      $region53: #{tpu_custom_call.1} parent=5 // pred_check
        %p359 = pneg %p358
      $region54: #{tpu_custom_call.1} parent=5 // pred_check_branch
        %361 = sbr.rel (%p359) target = $region56
      $region55: #{tpu_custom_call.1} parent=5 // pred_region
        %s362 = ssub.s32 %s15, 2
        // Predicated region
        $region57: #{tpu_custom_call.1} parent=55 // pred_check
          %p363 = pneg %p151
        $region58: #{tpu_custom_call.1} parent=55 // pred_check_branch
          %365 = sbr.rel (%p363) target = $region60
        $region59: #{tpu_custom_call.1} parent=55 // pred_region
          %s366 = sand.u32 %s136, 1
          %s367 = scalar_lea.sflag [#allocation5], %s366
          %s368 = sand.u32 %s136, 1
          %s369 = smul.addr %s368, 8
          %s370 = scalar_lea.vmem [#allocation6], %s369
          %372 = dma.done %s367, 128
        $region60: #{tpu_custom_call.1} parent=55 // pred_fallthru
          _
      $region56: #{tpu_custom_call.1} parent=5 // pred_fallthru
        _
    $region6: #{tpu_custom_call.1} parent=1 // loop_footer
      %s19 = sadd.s32 1, %s15
    $region7: #{tpu_custom_call.1} parent=1 // loop_footer_branch
      %14 = sbr.rel target = $region3
    $region8: #{tpu_custom_call.1} parent=1 // loop_exit
      _
    %373 = vsyncpa [#allocation4], 1
    %s374 = scalar_lea.sflag [#allocation4], 1
    %375 = vsyncpa %s374, 1
    %376 = vsyncpa [#allocation5], 1
    %s377 = scalar_lea.sflag [#allocation5], 1
    %378 = vsyncpa %s377, 1

</llo_original>
